<compile_context>
chip_gen: v7x
topology: tpu7x:2x2x1
jax: 0.10.0
libtpu: 0.0.40
codegen_flags: <defaults>
</compile_context>

<pallas_src>
import functools

import jax
import jax.numpy as jnp
from jax.experimental import pallas as pl
from jax.experimental.pallas import tpu as pltpu


_REG_DIM = 3          # regression head width
_TB_MAX = 2048        # max batch tile (multiple of 8)


def _round_up(n, m):
    return -(-n // m) * m


def _race_controller_kernel(
    x_ref,
    w1_ref, b1_ref,
    w2_ref, b2_ref,
    w3_ref, b3_ref,
    wh1_ref, bh1_ref,
    wh2_ref, bh2_ref,
    out_ref,
):
    # Shared trunk: Linear -> ReLU (BN folded into the following Linear,
    # Dropout = identity at inference).
    x = x_ref[...]
    if x.dtype != jnp.bfloat16:
        x = x.astype(jnp.bfloat16)
    h = jnp.maximum(
        jnp.dot(x, w1_ref[...], preferred_element_type=jnp.float32) + b1_ref[...], 0.0)
    h = jnp.maximum(
        jnp.dot(h.astype(jnp.bfloat16), w2_ref[...],
                preferred_element_type=jnp.float32) + b2_ref[...], 0.0)
    h = jnp.maximum(
        jnp.dot(h.astype(jnp.bfloat16), w3_ref[...],
                preferred_element_type=jnp.float32) + b3_ref[...], 0.0)

    # Fused heads: lanes 0:32 = regression hidden, 32:64 = classification hidden.
    hc = jnp.maximum(
        jnp.dot(h.astype(jnp.bfloat16), wh1_ref[...],
                preferred_element_type=jnp.float32) + bh1_ref[...], 0.0)
    # Block-diagonal, lane-padded second layer: reg in lanes 0:3, cls in 3:3+NG.
    out = jnp.dot(hc.astype(jnp.bfloat16), wh2_ref[...],
                  preferred_element_type=jnp.float32) + bh2_ref[...]

    # tanh only on the regression lanes; classification logits untouched.
    lane = jax.lax.broadcasted_iota(jnp.int32, out.shape, dimension=1)
    out_ref[...] = jnp.where(lane < _REG_DIM, jnp.tanh(out), out).astype(out_ref.dtype)


def prepare_params(params, num_gear_classes=8):
    """One-time host-side prep: fold BN, fuse heads, pad lanes, cast to bf16."""
    (w1, b1, s1, t1, w2, b2, s2, t2, w3, b3, s3, t3,
     wr1, br1, wr2, br2, wc1, bc1, wc2, bc2) = params

    out_lanes = max(16, _round_up(_REG_DIM + num_gear_classes, 8))

    # Fold post-ReLU BN (scale s, shift t) into the next linear layer:
    #   (h*s + t) @ W + b == h @ (diag(s) @ W) + (t @ W + b)
    w2f = s1.reshape(-1, 1) * w2
    b2f = t1 @ w2 + b2
    w3f = s2.reshape(-1, 1) * w3
    b3f = t2 @ w3 + b3

    # Fuse both heads' first layers and fold the final BN into them.
    wh1 = jnp.concatenate([wr1, wc1], axis=1)            # [64, 64]
    bh1 = jnp.concatenate([br1, bc1], axis=1)            # [1, 64]
    wh1f = s3.reshape(-1, 1) * wh1
    bh1f = t3 @ wh1 + bh1

    # Fuse the heads' second layers block-diagonally into a narrow lane slab.
    wh2 = jnp.zeros((64, out_lanes), jnp.float32)
    wh2 = wh2.at[:32, :_REG_DIM].set(wr2)
    wh2 = wh2.at[32:, _REG_DIM:_REG_DIM + num_gear_classes].set(wc2)
    bh2 = jnp.zeros((1, out_lanes), jnp.float32)
    bh2 = bh2.at[:, :_REG_DIM].set(br2)
    bh2 = bh2.at[:, _REG_DIM:_REG_DIM + num_gear_classes].set(bc2)

    bf16 = lambda w: w.astype(jnp.bfloat16)   # weights bf16 (MXU), biases stay f32
    return (bf16(w1), b1, bf16(w2f), b2f, bf16(w3f), b3f,
            bf16(wh1f), bh1f, bf16(wh2), bh2)


def _batch_tile(B, tb_max=_TB_MAX):
    """Pick the batch tile: big (amortize per-step overhead), multiple of 8,
    and split into >= 2 grid steps when possible so v7x uses both TCs."""
    if B <= 8:
        return B
    tb = min(tb_max, _round_up(B, 8))
    if -(-B // tb) < 2:                       # would be a single grid step
        tb = _round_up(-(-B // 2), 8)         # split batch across 2 steps
    return tb


def _vmem_limit_bytes(tb, input_dim, out_lanes, packed_params):
    """Rough double-buffered footprint (+2x headroom), clamped to [32,64] MiB."""
    weight_bytes = sum(int(p.size) * p.dtype.itemsize for p in packed_params)
    io_bytes = 2 * tb * (input_dim * 4 + out_lanes * 2)            # 2x-buffered tiles
    act_bytes = tb * (256 + 128 + 64 + 64 + out_lanes) * 6         # f32 + bf16 temps
    est = 2 * (weight_bytes + io_bytes + act_bytes) + (4 << 20)
    return int(min(max(est, 32 << 20), 64 << 20))


@functools.partial(jax.jit, static_argnames=("num_gear_classes",))
def race_controller_forward(x, packed_params, num_gear_classes=8):
    """x: [B, input_dim] (f32 or bf16).  Returns (reg [B,3], cls [B,NG]) in f32."""
    B, input_dim = x.shape
    out_lanes = packed_params[-1].shape[-1]
    assert _REG_DIM + num_gear_classes <= out_lanes

    tb = _batch_tile(B)
    grid = (pl.cdiv(B, tb),)

    tiled_in = pl.BlockSpec((tb, input_dim), lambda i: (i, 0))
    resident = lambda arr: pl.BlockSpec(arr.shape, lambda i: (0, 0))  # stays in VMEM
    tiled_out = pl.BlockSpec((tb, out_lanes), lambda i: (i, 0))

    out = pl.pallas_call(
        _race_controller_kernel,
        grid=grid,
        in_specs=[tiled_in] + [resident(p) for p in packed_params],
        out_specs=tiled_out,
        out_shape=jax.ShapeDtypeStruct((B, out_lanes), jnp.bfloat16),
        compiler_params=pltpu.CompilerParams(
            dimension_semantics=("parallel",),
            vmem_limit_bytes=_vmem_limit_bytes(tb, input_dim, out_lanes,
                                               packed_params)),
    )(x, *packed_params)

    reg = out[:, :_REG_DIM].astype(jnp.float32)
    cls = out[:, _REG_DIM:_REG_DIM + num_gear_classes].astype(jnp.float32)
    return reg, cls


def init_params(key, input_dim, num_gear_classes=8, eps=1e-5):
    """Deterministic synthetic parameters (shapes match the PyTorch module)."""
    dims = [(input_dim, 256), (256, 128), (128, 64)]
    keys = jax.random.split(key, 32)
    ki = iter(range(32))

    def linear(kw, kb, fan_in, fan_out):
        bound = 1.0 / jnp.sqrt(fan_in)
        w = jax.random.uniform(kw, (fan_in, fan_out), jnp.float32, -bound, bound)
        b = jax.random.uniform(kb, (1, fan_out), jnp.float32, -bound, bound)
        return w, b

    params = []
    for fan_in, fan_out in dims:
        w, b = linear(keys[next(ki)], keys[next(ki)], fan_in, fan_out)
        gamma = 1.0 + 0.1 * jax.random.normal(keys[next(ki)], (1, fan_out), jnp.float32)
        beta = 0.1 * jax.random.normal(keys[next(ki)], (1, fan_out), jnp.float32)
        run_mean = 0.05 * jax.random.normal(keys[next(ki)], (1, fan_out), jnp.float32)
        run_var = jnp.abs(1.0 + 0.1 * jax.random.normal(keys[next(ki)], (1, fan_out),
                                                        jnp.float32))
        scale = gamma / jnp.sqrt(run_var + eps)
        shift = beta - run_mean * scale
        params.extend([w, b, scale, shift])

    wr1, br1 = linear(keys[next(ki)], keys[next(ki)], 64, 32)
    wr2, br2 = linear(keys[next(ki)], keys[next(ki)], 32, 3)
    wc1, bc1 = linear(keys[next(ki)], keys[next(ki)], 64, 32)
    wc2, bc2 = linear(keys[next(ki)], keys[next(ki)], 32, num_gear_classes)
    params.extend([wr1, br1, wr2, br2, wc1, bc1, wc2, bc2])
    return tuple(params)


def reference_forward(x, params):
    (w1, b1, s1, t1, w2, b2, s2, t2, w3, b3, s3, t3,
     wr1, br1, wr2, br2, wc1, bc1, wc2, bc2) = params
    h = jnp.maximum(x @ w1 + b1, 0.0) * s1 + t1
    h = jnp.maximum(h @ w2 + b2, 0.0) * s2 + t2
    h = jnp.maximum(h @ w3 + b3, 0.0) * s3 + t3
    reg = jnp.tanh(jnp.maximum(h @ wr1 + br1, 0.0) @ wr2 + br2)
    cls = jnp.maximum(h @ wc1 + bc1, 0.0) @ wc2 + bc2
    return reg, cls


if __name__ == "__main__":
    B, INPUT_DIM, NUM_GEARS = 8, 32, 8

    key = jax.random.PRNGKey(0)
    kx, kp = jax.random.split(key)
    x = jax.random.normal(kx, (B, INPUT_DIM), jnp.float32)
    raw_params = init_params(kp, INPUT_DIM, NUM_GEARS)

    # One-time parameter prep (BN fold, head fusion, lane padding, bf16 cast),
    # hoisted out of the jitted forward so it is not redone per call.
    packed = prepare_params(raw_params, NUM_GEARS)

    reg_out, cls_out = race_controller_forward(x, packed, num_gear_classes=NUM_GEARS)
    jax.block_until_ready((reg_out, cls_out))

    reg_ref, cls_ref = reference_forward(x, raw_params)
    assert reg_out.shape == (B, 3) and cls_out.shape == (B, NUM_GEARS)
    # bf16 MXU weights / bf16 output -> relaxed tolerance vs. the full-f32 reference.
    assert jnp.allclose(reg_out, reg_ref, atol=5e-2, rtol=5e-2)
    assert jnp.allclose(cls_out, cls_ref, atol=5e-2, rtol=5e-2)

    print("KERNEL_OK")
</pallas_src>

<mosaic_0001>
module attributes {stable_mosaic.version = 11 : i64} {
  func.func @_race_controller_kernel(%arg0: i32, %arg1: memref<8x32xf32, #tpu.memory_space<vmem>>, %arg2: memref<32x256xbf16, #tpu.memory_space<vmem>>, %arg3: memref<1x256xf32, #tpu.memory_space<vmem>>, %arg4: memref<256x128xbf16, #tpu.memory_space<vmem>>, %arg5: memref<1x128xf32, #tpu.memory_space<vmem>>, %arg6: memref<128x64xbf16, #tpu.memory_space<vmem>>, %arg7: memref<1x64xf32, #tpu.memory_space<vmem>>, %arg8: memref<64x64xbf16, #tpu.memory_space<vmem>>, %arg9: memref<1x64xf32, #tpu.memory_space<vmem>>, %arg10: memref<64x16xbf16, #tpu.memory_space<vmem>>, %arg11: memref<1x16xf32, #tpu.memory_space<vmem>>, %arg12: memref<8x16xbf16, #tpu.memory_space<vmem>>) attributes {dimension_semantics = [#tpu.dimension_semantics<parallel>], iteration_bounds = array<i64: 1>, scalar_prefetch = 0 : i64, scratch_operands = 0 : i64, tpu.core_type = #tpu.core_type<tc>, window_params = [{transform_indices = @transform_0, window_bounds = array<i64: 8, 32>}, {pipeline_mode = #tpu.pipeline_mode<synchronous>, transform_indices = @transform_1, window_bounds = array<i64: 32, 256>}, {pipeline_mode = #tpu.pipeline_mode<synchronous>, transform_indices = @transform_2, window_bounds = array<i64: 1, 256>}, {pipeline_mode = #tpu.pipeline_mode<synchronous>, transform_indices = @transform_3, window_bounds = array<i64: 256, 128>}, {pipeline_mode = #tpu.pipeline_mode<synchronous>, transform_indices = @transform_4, window_bounds = array<i64: 1, 128>}, {pipeline_mode = #tpu.pipeline_mode<synchronous>, transform_indices = @transform_5, window_bounds = array<i64: 128, 64>}, {pipeline_mode = #tpu.pipeline_mode<synchronous>, transform_indices = @transform_6, window_bounds = array<i64: 1, 64>}, {pipeline_mode = #tpu.pipeline_mode<synchronous>, transform_indices = @transform_7, window_bounds = array<i64: 64, 64>}, {pipeline_mode = #tpu.pipeline_mode<synchronous>, transform_indices = @transform_8, window_bounds = array<i64: 1, 64>}, {pipeline_mode = #tpu.pipeline_mode<synchronous>, transform_indices = @transform_9, window_bounds = array<i64: 64, 16>}, {pipeline_mode = #tpu.pipeline_mode<synchronous>, transform_indices = @transform_10, window_bounds = array<i64: 1, 16>}, {transform_indices = @transform_11, window_bounds = array<i64: 8, 16>}]} {
    %c0 = arith.constant 0 : index
    %c0_0 = arith.constant 0 : index
    %0 = vector.load %arg1[%c0, %c0_0] : memref<8x32xf32, #tpu.memory_space<vmem>>, vector<8x32xf32>
    %1 = arith.truncf %0 : vector<8x32xf32> to vector<8x32xbf16>
    %c0_1 = arith.constant 0 : index
    %c0_2 = arith.constant 0 : index
    %2 = vector.load %arg2[%c0_1, %c0_2] : memref<32x256xbf16, #tpu.memory_space<vmem>>, vector<32x256xbf16>
    %cst = arith.constant dense<0.000000e+00> : vector<8x256xf32>
    %3 = tpu.matmul %1, %2, %cst {dimension_numbers = #tpu.dot_dimension_numbers<[1], [0], [0], [1], [0, 0, 1, 1], [], []>} : vector<8x32xbf16>, vector<32x256xbf16>, vector<8x256xf32> -> vector<8x256xf32>
    %c0_3 = arith.constant 0 : index
    %c0_4 = arith.constant 0 : index
    %4 = vector.load %arg3[%c0_3, %c0_4] : memref<1x256xf32, #tpu.memory_space<vmem>>, vector<1x256xf32>
    %5 = vector.broadcast %4 : vector<1x256xf32> to vector<8x256xf32>
    %6 = arith.addf %3, %5 : vector<8x256xf32>
    %cst_5 = arith.constant 0.000000e+00 : f32
    %7 = vector.broadcast %cst_5 : f32 to vector<8x256xf32>
    %8 = arith.maximumf %6, %7 : vector<8x256xf32>
    %9 = arith.truncf %8 : vector<8x256xf32> to vector<8x256xbf16>
    %c0_6 = arith.constant 0 : index
    %c0_7 = arith.constant 0 : index
    %10 = vector.load %arg4[%c0_6, %c0_7] : memref<256x128xbf16, #tpu.memory_space<vmem>>, vector<256x128xbf16>
    %cst_8 = arith.constant dense<0.000000e+00> : vector<8x128xf32>
    %11 = tpu.matmul %9, %10, %cst_8 {dimension_numbers = #tpu.dot_dimension_numbers<[1], [0], [0], [1], [0, 0, 1, 1], [], []>} : vector<8x256xbf16>, vector<256x128xbf16>, vector<8x128xf32> -> vector<8x128xf32>
    %c0_9 = arith.constant 0 : index
    %c0_10 = arith.constant 0 : index
    %12 = vector.load %arg5[%c0_9, %c0_10] : memref<1x128xf32, #tpu.memory_space<vmem>>, vector<1x128xf32>
    %13 = vector.broadcast %12 : vector<1x128xf32> to vector<8x128xf32>
    %14 = arith.addf %11, %13 : vector<8x128xf32>
    %cst_11 = arith.constant 0.000000e+00 : f32
    %15 = vector.broadcast %cst_11 : f32 to vector<8x128xf32>
    %16 = arith.maximumf %14, %15 : vector<8x128xf32>
    %17 = arith.truncf %16 : vector<8x128xf32> to vector<8x128xbf16>
    %c0_12 = arith.constant 0 : index
    %c0_13 = arith.constant 0 : index
    %18 = vector.load %arg6[%c0_12, %c0_13] : memref<128x64xbf16, #tpu.memory_space<vmem>>, vector<128x64xbf16>
    %cst_14 = arith.constant dense<0.000000e+00> : vector<8x64xf32>
    %19 = tpu.matmul %17, %18, %cst_14 {dimension_numbers = #tpu.dot_dimension_numbers<[1], [0], [0], [1], [0, 0, 1, 1], [], []>} : vector<8x128xbf16>, vector<128x64xbf16>, vector<8x64xf32> -> vector<8x64xf32>
    %c0_15 = arith.constant 0 : index
    %c0_16 = arith.constant 0 : index
    %20 = vector.load %arg7[%c0_15, %c0_16] : memref<1x64xf32, #tpu.memory_space<vmem>>, vector<1x64xf32>
    %21 = vector.broadcast %20 : vector<1x64xf32> to vector<8x64xf32>
    %22 = arith.addf %19, %21 : vector<8x64xf32>
    %cst_17 = arith.constant 0.000000e+00 : f32
    %23 = vector.broadcast %cst_17 : f32 to vector<8x64xf32>
    %24 = arith.maximumf %22, %23 : vector<8x64xf32>
    %25 = arith.truncf %24 : vector<8x64xf32> to vector<8x64xbf16>
    %c0_18 = arith.constant 0 : index
    %c0_19 = arith.constant 0 : index
    %26 = vector.load %arg8[%c0_18, %c0_19] : memref<64x64xbf16, #tpu.memory_space<vmem>>, vector<64x64xbf16>
    %cst_20 = arith.constant dense<0.000000e+00> : vector<8x64xf32>
    %27 = tpu.matmul %25, %26, %cst_20 {dimension_numbers = #tpu.dot_dimension_numbers<[1], [0], [0], [1], [0, 0, 1, 1], [], []>} : vector<8x64xbf16>, vector<64x64xbf16>, vector<8x64xf32> -> vector<8x64xf32>
    %c0_21 = arith.constant 0 : index
    %c0_22 = arith.constant 0 : index
    %28 = vector.load %arg9[%c0_21, %c0_22] : memref<1x64xf32, #tpu.memory_space<vmem>>, vector<1x64xf32>
    %29 = vector.broadcast %28 : vector<1x64xf32> to vector<8x64xf32>
    %30 = arith.addf %27, %29 : vector<8x64xf32>
    %cst_23 = arith.constant 0.000000e+00 : f32
    %31 = vector.broadcast %cst_23 : f32 to vector<8x64xf32>
    %32 = arith.maximumf %30, %31 : vector<8x64xf32>
    %33 = arith.truncf %32 : vector<8x64xf32> to vector<8x64xbf16>
    %c0_24 = arith.constant 0 : index
    %c0_25 = arith.constant 0 : index
    %34 = vector.load %arg10[%c0_24, %c0_25] : memref<64x16xbf16, #tpu.memory_space<vmem>>, vector<64x16xbf16>
    %cst_26 = arith.constant dense<0.000000e+00> : vector<8x16xf32>
    %35 = tpu.matmul %33, %34, %cst_26 {dimension_numbers = #tpu.dot_dimension_numbers<[1], [0], [0], [1], [0, 0, 1, 1], [], []>} : vector<8x64xbf16>, vector<64x16xbf16>, vector<8x16xf32> -> vector<8x16xf32>
    %c0_27 = arith.constant 0 : index
    %c0_28 = arith.constant 0 : index
    %36 = vector.load %arg11[%c0_27, %c0_28] : memref<1x16xf32, #tpu.memory_space<vmem>>, vector<1x16xf32>
    %37 = vector.broadcast %36 : vector<1x16xf32> to vector<8x16xf32>
    %38 = arith.addf %35, %37 : vector<8x16xf32>
    %39 = tpu.iota {dimensions = array<i32: 1>} : vector<8x16xi32>
    %c3_i32 = arith.constant 3 : i32
    %40 = vector.broadcast %c3_i32 : i32 to vector<8x16xi32>
    %41 = arith.cmpi slt, %39, %40 : vector<8x16xi32>
    %42 = math.tanh %38 : vector<8x16xf32>
    %43 = arith.select %41, %42, %38 : vector<8x16xi1>, vector<8x16xf32>
    %44 = arith.truncf %43 : vector<8x16xf32> to vector<8x16xbf16>
    %c0_29 = arith.constant 0 : index
    %c0_30 = arith.constant 0 : index
    %45 = vector.load %arg12[%c0_29, %c0_30] : memref<8x16xbf16, #tpu.memory_space<vmem>>, vector<8x16xbf16>
    tpu.vector_store %arg12[%c0_29, %c0_30], %44 {strides = array<i32>} : memref<8x16xbf16, #tpu.memory_space<vmem>>, vector<8x16xbf16>,
    return
  }
  func.func @transform_0(%arg0: i32) -> (i32, i32) {
    %c0_i32 = arith.constant 0 : i32
    %c0_i32_0 = arith.constant 0 : i32
    return %arg0, %c0_i32 : i32, i32
  }
  func.func @transform_1(%arg0: i32) -> (i32, i32) {
    %c0_i32 = arith.constant 0 : i32
    %c0_i32_0 = arith.constant 0 : i32
    %c0_i32_1 = arith.constant 0 : i32
    return %c0_i32, %c0_i32_0 : i32, i32
  }
  func.func @transform_2(%arg0: i32) -> (i32, i32) {
    %c0_i32 = arith.constant 0 : i32
    %c0_i32_0 = arith.constant 0 : i32
    %c0_i32_1 = arith.constant 0 : i32
    return %c0_i32, %c0_i32_0 : i32, i32
  }
  func.func @transform_3(%arg0: i32) -> (i32, i32) {
    %c0_i32 = arith.constant 0 : i32
    %c0_i32_0 = arith.constant 0 : i32
    %c0_i32_1 = arith.constant 0 : i32
    return %c0_i32, %c0_i32_0 : i32, i32
  }
  func.func @transform_4(%arg0: i32) -> (i32, i32) {
    %c0_i32 = arith.constant 0 : i32
    %c0_i32_0 = arith.constant 0 : i32
    %c0_i32_1 = arith.constant 0 : i32
    return %c0_i32, %c0_i32_0 : i32, i32
  }
  func.func @transform_5(%arg0: i32) -> (i32, i32) {
    %c0_i32 = arith.constant 0 : i32
    %c0_i32_0 = arith.constant 0 : i32
    %c0_i32_1 = arith.constant 0 : i32
    return %c0_i32, %c0_i32_0 : i32, i32
  }
  func.func @transform_6(%arg0: i32) -> (i32, i32) {
    %c0_i32 = arith.constant 0 : i32
    %c0_i32_0 = arith.constant 0 : i32
    %c0_i32_1 = arith.constant 0 : i32
    return %c0_i32, %c0_i32_0 : i32, i32
  }
  func.func @transform_7(%arg0: i32) -> (i32, i32) {
    %c0_i32 = arith.constant 0 : i32
    %c0_i32_0 = arith.constant 0 : i32
    %c0_i32_1 = arith.constant 0 : i32
    return %c0_i32, %c0_i32_0 : i32, i32
  }
  func.func @transform_8(%arg0: i32) -> (i32, i32) {
    %c0_i32 = arith.constant 0 : i32
    %c0_i32_0 = arith.constant 0 : i32
    %c0_i32_1 = arith.constant 0 : i32
    return %c0_i32, %c0_i32_0 : i32, i32
  }
  func.func @transform_9(%arg0: i32) -> (i32, i32) {
    %c0_i32 = arith.constant 0 : i32
    %c0_i32_0 = arith.constant 0 : i32
    %c0_i32_1 = arith.constant 0 : i32
    return %c0_i32, %c0_i32_0 : i32, i32
  }
  func.func @transform_10(%arg0: i32) -> (i32, i32) {
    %c0_i32 = arith.constant 0 : i32
    %c0_i32_0 = arith.constant 0 : i32
    %c0_i32_1 = arith.constant 0 : i32
    return %c0_i32, %c0_i32_0 : i32, i32
  }
  func.func @transform_11(%arg0: i32) -> (i32, i32) {
    %c0_i32 = arith.constant 0 : i32
    %c0_i32_0 = arith.constant 0 : i32
    return %arg0, %c0_i32 : i32, i32
  }
}

</mosaic_0001>

<llo_original>
// kernel: race_controller_forward.1
$region0: #{race_controller_forward.1}
  #allocation0 [shape = 'u32[]', space=smem, size = 0x4, offset = 0x4, fixed_abs, tag = 'smem constant byte address 0x4 - core index']
  #allocation1 [shape = 'u32[144,128]{1,0:T(1,128)}', space=vmem, size = 0x12000, scoped, tag = 'internal scratch']
  %s0 = inlined_call_operand.hbm [shape: f32[8,32], index: 0, kind: input, shape index: {}]
  %s1 = inlined_call_operand.hbm [shape: bf16[32,256], index: 1, kind: input, shape index: {}]
  %s2 = inlined_call_operand.vmem [shape: f32[1,256], index: 2, kind: input, shape index: {}]
  %s3 = inlined_call_operand.vmem [shape: bf16[256,128], index: 3, kind: input, shape index: {}]
  %s4 = inlined_call_operand.hbm [shape: f32[1,128], index: 4, kind: input, shape index: {}]
  %s5 = inlined_call_operand.vmem [shape: bf16[128,64], index: 5, kind: input, shape index: {}]
  %s6 = inlined_call_operand.hbm [shape: f32[1,64], index: 6, kind: input, shape index: {}]
  %s7 = inlined_call_operand.vmem [shape: bf16[64,64], index: 7, kind: input, shape index: {}]
  %s8 = inlined_call_operand.hbm [shape: f32[1,64], index: 8, kind: input, shape index: {}]
  %s9 = inlined_call_operand.vmem [shape: bf16[64,16], index: 9, kind: input, shape index: {}]
  %s10 = inlined_call_operand.vmem [shape: f32[1,16], index: 10, kind: input, shape index: {}]
  %s11 = inlined_call_operand.vmem [shape: bf16[8,16], index: 11, kind: output, shape index: {}]
  %s12 = sld [smem:[#allocation0]]
  $region74: #{race_controller_forward.1} parent=0
    _
  %s14 = ssub.s32 1, %s12
  %s15 = scalar_select 0, %s14, %s12
  $region1: #{race_controller_forward.1} parent=0
    #allocation2 [shape = 'u8[4096]{0}', space=vmem, size = 0x1000, scoped, tag = 'input window, operand 0, single buffered']
    #allocation3 [shape = 's32[1]{0}', space=sflag, size = 0x4, scoped, tag = 'scoped memory for race_controller_forward.1']
    #allocation4 [shape = 'u8[16384]{0}', space=vmem, size = 0x4000, scoped, tag = 'input window, operand 1, single buffered']
    #allocation5 [shape = 's32[1]{0}', space=sflag, size = 0x4, scoped, tag = 'scoped memory for race_controller_forward.1']
    #allocation6 [shape = 'u8[512]{0}', space=vmem, size = 0x400, scoped, tag = 'input window, operand 4, single buffered']
    #allocation7 [shape = 'u8[512]{0}', space=vmem, size = 0x400, scoped, tag = 'input window, operand 6, single buffered']
    #allocation8 [shape = 's32[1]{0}', space=sflag, size = 0x4, scoped, tag = 'scoped memory for race_controller_forward.1']
    #allocation9 [shape = 'u8[512]{0}', space=vmem, size = 0x400, scoped, tag = 'input window, operand 8, single buffered']
    %16 = vsyncpa [#allocation3], 0
    %17 = vsyncpa [#allocation5], 0
    %18 = vsyncpa [#allocation8], 0
    // Predicated region
    $region2: #{race_controller_forward.1} parent=1 // pred_check
      _
    $region3: #{race_controller_forward.1} parent=1 // pred_check_branch
      %20 = sbr.rel (0) target = $region5
    $region4: #{race_controller_forward.1} parent=1 // pred_region
      %s22 = ssub.s32 128, 128
      %23 = vsyncadd [#allocation3], %s22
      %s25 = sshll.u32 [#allocation2], 4
      %s26 = int_to_ptr.vmem [resolvable:$true] %s25
      %28 = dma.hbm_to_vmem [thread:$0]  %s0, 128, %s26, [#allocation3]
    $region5: #{race_controller_forward.1} parent=1 // pred_fallthru
      _
    // Predicated region
    $region6: #{race_controller_forward.1} parent=1 // pred_check
      _
    $region7: #{race_controller_forward.1} parent=1 // pred_check_branch
      %30 = sbr.rel (0) target = $region9
    $region8: #{race_controller_forward.1} parent=1 // pred_region
      %s32 = ssub.s32 512, 512
      %33 = vsyncadd [#allocation5], %s32
      %s34 = sshll.u32 [#allocation4], 4
      %s35 = int_to_ptr.vmem [resolvable:$true] %s34
      %40 = dma.hbm_to_vmem [thread:$0]  %s1, 512, %s35, [#allocation5], 128, 128, 8
    $region9: #{race_controller_forward.1} parent=1 // pred_fallthru
      _
    // Predicated region
    $region10: #{race_controller_forward.1} parent=1 // pred_check
      _
    $region11: #{race_controller_forward.1} parent=1 // pred_check_branch
      %42 = sbr.rel (0) target = $region13
    $region12: #{race_controller_forward.1} parent=1 // pred_region
      _
    $region13: #{race_controller_forward.1} parent=1 // pred_fallthru
      _
    // Predicated region
    $region14: #{race_controller_forward.1} parent=1 // pred_check
      _
    $region15: #{race_controller_forward.1} parent=1 // pred_check_branch
      %44 = sbr.rel (0) target = $region17
    $region16: #{race_controller_forward.1} parent=1 // pred_region
      _
    $region17: #{race_controller_forward.1} parent=1 // pred_fallthru
      _
    // Predicated region
    $region18: #{race_controller_forward.1} parent=1 // pred_check
      _
    $region19: #{race_controller_forward.1} parent=1 // pred_check_branch
      %46 = sbr.rel (0) target = $region21
    $region20: #{race_controller_forward.1} parent=1 // pred_region
      %s48 = ssub.s32 16, 16
      %49 = vsyncadd [#allocation5], %s48
      %s51 = sshll.u32 [#allocation6], 4
      %s52 = int_to_ptr.vmem [resolvable:$true] %s51
      %54 = dma.hbm_to_vmem [thread:$0]  %s4, 16, %s52, [#allocation5]
    $region21: #{race_controller_forward.1} parent=1 // pred_fallthru
      _
    // Predicated region
    $region22: #{race_controller_forward.1} parent=1 // pred_check
      _
    $region23: #{race_controller_forward.1} parent=1 // pred_check_branch
      %56 = sbr.rel (0) target = $region25
    $region24: #{race_controller_forward.1} parent=1 // pred_region
      _
    $region25: #{race_controller_forward.1} parent=1 // pred_fallthru
      _
    // Predicated region
    $region26: #{race_controller_forward.1} parent=1 // pred_check
      _
    $region27: #{race_controller_forward.1} parent=1 // pred_check_branch
      %58 = sbr.rel (0) target = $region29
    $region28: #{race_controller_forward.1} parent=1 // pred_region
      %s60 = ssub.s32 16, 16
      %61 = vsyncadd [#allocation8], %s60
      %s63 = sshll.u32 [#allocation7], 4
      %s64 = int_to_ptr.vmem [resolvable:$true] %s63
      %66 = dma.hbm_to_vmem [thread:$0]  %s6, 16, %s64, [#allocation8]
    $region29: #{race_controller_forward.1} parent=1 // pred_fallthru
      _
    // Predicated region
    $region30: #{race_controller_forward.1} parent=1 // pred_check
      _
    $region31: #{race_controller_forward.1} parent=1 // pred_check_branch
      %68 = sbr.rel (0) target = $region33
    $region32: #{race_controller_forward.1} parent=1 // pred_region
      _
    $region33: #{race_controller_forward.1} parent=1 // pred_fallthru
      _
    // Predicated region
    $region34: #{race_controller_forward.1} parent=1 // pred_check
      _
    $region35: #{race_controller_forward.1} parent=1 // pred_check_branch
      %70 = sbr.rel (0) target = $region37
    $region36: #{race_controller_forward.1} parent=1 // pred_region
      %s72 = ssub.s32 16, 16
      %73 = vsyncadd [#allocation8], %s72
      %s75 = sshll.u32 [#allocation9], 4
      %s76 = int_to_ptr.vmem [resolvable:$true] %s75
      %78 = dma.hbm_to_vmem [thread:$0]  %s8, 16, %s76, [#allocation8]
    $region37: #{race_controller_forward.1} parent=1 // pred_fallthru
      _
    // Predicated region
    $region38: #{race_controller_forward.1} parent=1 // pred_check
      _
    $region39: #{race_controller_forward.1} parent=1 // pred_check_branch
      %80 = sbr.rel (0) target = $region41
    $region40: #{race_controller_forward.1} parent=1 // pred_region
      _
    $region41: #{race_controller_forward.1} parent=1 // pred_fallthru
      _
    // Predicated region
    $region42: #{race_controller_forward.1} parent=1 // pred_check
      _
    $region43: #{race_controller_forward.1} parent=1 // pred_check_branch
      %82 = sbr.rel (0) target = $region45
    $region44: #{race_controller_forward.1} parent=1 // pred_region
      _
    $region45: #{race_controller_forward.1} parent=1 // pred_fallthru
      _
    // Predicated region
    $region46: #{race_controller_forward.1} parent=1 // pred_check
      _
    $region47: #{race_controller_forward.1} parent=1 // pred_check_branch
      %84 = sbr.rel (0) target = $region49
    $region48: #{race_controller_forward.1} parent=1 // pred_region
      %85 = dma.done [#allocation3], 128
    $region49: #{race_controller_forward.1} parent=1 // pred_fallthru
      _
    // Predicated region
    $region50: #{race_controller_forward.1} parent=1 // pred_check
      _
    $region51: #{race_controller_forward.1} parent=1 // pred_check_branch
      %87 = sbr.rel (0) target = $region53
    $region52: #{race_controller_forward.1} parent=1 // pred_region
      %88 = dma.done [#allocation5], 512
    $region53: #{race_controller_forward.1} parent=1 // pred_fallthru
      _
    // Predicated region
    $region54: #{race_controller_forward.1} parent=1 // pred_check
      _
    $region55: #{race_controller_forward.1} parent=1 // pred_check_branch
      %90 = sbr.rel (0) target = $region57
    $region56: #{race_controller_forward.1} parent=1 // pred_region
      %91 = dma.done [#allocation5], 16
    $region57: #{race_controller_forward.1} parent=1 // pred_fallthru
      _
    // Predicated region
    $region58: #{race_controller_forward.1} parent=1 // pred_check
      _
    $region59: #{race_controller_forward.1} parent=1 // pred_check_branch
      %93 = sbr.rel (0) target = $region61
    $region60: #{race_controller_forward.1} parent=1 // pred_region
      %94 = dma.done [#allocation8], 16
    $region61: #{race_controller_forward.1} parent=1 // pred_fallthru
      _
    // Predicated region
    $region62: #{race_controller_forward.1} parent=1 // pred_check
      _
    $region63: #{race_controller_forward.1} parent=1 // pred_check_branch
      %96 = sbr.rel (0) target = $region65
    $region64: #{race_controller_forward.1} parent=1 // pred_region
      %97 = dma.done [#allocation8], 16
    $region65: #{race_controller_forward.1} parent=1 // pred_fallthru
      _
    %v99 = vld [vmem:[#allocation2] sm:$0xff]
    %v100 = vpack.c.bf16 %v99, %v99
    %v101 = vld [vmem:[#allocation4] sm:$0xff]
    %v102 = vld [vmem:[#allocation4 + $0x8] sm:$0xff]
    %v103 = vld [vmem:[#allocation4 + $0x10] sm:$0xff]
    %v104 = vld [vmem:[#allocation4 + $0x18] sm:$0xff]
    %v105 = vld [vmem:[%s2] sm:$0x3]
    %v107 = vlaneseq
    %v108 = vshrl.u32 %v107, 7
    %v109 = vsub.s32 0, %v108
    %v110 = vrot.slane %v105, %v109
    %v111 = vlaneseq
    %v112 = vshrl.u32 %v111, 7
    %v113 = vsub.s32 1, %v112
    %v114 = vrot.slane %v105, %v113
    %v121 = vunpack.c.l.b16 %v101
    %v122 = vunpack.c.h.b16 %v101
    %v123 = vunpack.c.l.b16 %v102
    %v124 = vunpack.c.h.b16 %v102
    %v125 = vunpack.c.l.b16 %v103
    %v126 = vunpack.c.h.b16 %v103
    %v127 = vunpack.c.l.b16 %v104
    %v128 = vunpack.c.h.b16 %v104
    %v129 = vpack.c.b16 %v123, %v121
    %v130 = vpack.c.b16 %v124, %v122
    %v131 = vpack.c.b16 %v127, %v125
    %v132 = vpack.c.b16 %v128, %v126
    %vm137 = vcmask 261120
    %v139 = vsel %vm137, %v100, 0
    %141 = vmatprep.subr.bf16.mxu0 %v130
    %142 = vmatpush1.bf16.msra.mxu0 %v129
    %143 = vmatprep.subr.bf16.mxu0 %v132
    %144 = vmatpush1.bf16.msra.mxu0 %v131
    %145 = vmatprep.subr.bf16.mxu0 0
    %146 = vmatpush1.bf16.msra.mxu0 0
    %147 = vmatprep.subr.bf16.mxu0 0
    %148 = vmatpush1.bf16.msra.mxu0 0
    %149 = vmatprep.subr.bf16.mxu0 0
    %150 = vmatpush1.bf16.msra.mxu0 0
    %151 = vmatprep.subr.bf16.mxu0 0
    %152 = vmatpush1.bf16.msra.mxu0 0
    %153 = vmatprep.subr.bf16.mxu0 0
    %154 = vmatpush1.bf16.msra.mxu0 0
    %155 = vmatprep.subr.bf16.mxu0 0
    %156 = vmatpush1.bf16.msra.mxu0 0
    %157 = vmatprep.subr.bf16.mxu0 0
    %158 = vmatpush1.bf16.msra.mxu0 0
    %159 = vmatprep.subr.bf16.mxu0 0
    %160 = vmatpush1.bf16.msra.mxu0 0
    %161 = vmatprep.subr.bf16.mxu0 0
    %162 = vmatpush1.bf16.msra.mxu0 0
    %163 = vmatprep.subr.bf16.mxu0 0
    %164 = vmatpush1.bf16.msra.mxu0 0
    %165 = vmatprep.subr.bf16.mxu0 0
    %166 = vmatpush1.bf16.msra.mxu0 0
    %167 = vmatprep.subr.bf16.mxu0 0
    %168 = vmatpush1.bf16.msra.mxu0 0
    %169 = vmatprep.subr.bf16.mxu0 0
    %170 = vmatpush1.bf16.msra.mxu0 0
    %171 = vmatprep.subr.bf16.mxu0 0
    %172 = vmatpush1.bf16.msra.mxu0 0
    %173 = vmatprep.mubr.bf16.mxu0 0
    %174 = vmatmul.mubr.bf16.gmra.mrb[0].mxu0 %v139
    %v175 = vpop.f32.mrb[0].mxu0
    %v176 = vadd.f32 %v110, %v175
    %v177 = vpop.f32.mrb[0].mxu0
    %v178 = vadd.f32 %v114, %v177
    %v179 = vpop.f32.mrb[0].mxu0
    %v180 = vpop.f32.mrb[0].mxu0
    %181 = vdwg.mxu0
    %v182 = vmax.f32 %v176, 0.0
    %v183 = vmax.f32 %v178, 0.0
    %v184 = vpack.c.bf16 %v182, %v182
    %v185 = vpack.c.bf16 %v183, %v183
    %v186 = vld [vmem:[%s3] sm:$0xf]
    %v187 = vld [vmem:[%s3 + $0x4] sm:$0xf]
    %v188 = vld [vmem:[%s3 + $0x8] sm:$0xf]
    %v189 = vld [vmem:[%s3 + $0xc] sm:$0xf]
    %v190 = vld [vmem:[%s3 + $0x10] sm:$0xf]
    %v191 = vld [vmem:[%s3 + $0x14] sm:$0xf]
    %v192 = vld [vmem:[%s3 + $0x18] sm:$0xf]
    %v193 = vld [vmem:[%s3 + $0x1c] sm:$0xf]
    %v194 = vld [vmem:[%s3 + $0x20] sm:$0xf]
    %v195 = vld [vmem:[%s3 + $0x24] sm:$0xf]
    %v196 = vld [vmem:[%s3 + $0x28] sm:$0xf]
    %v197 = vld [vmem:[%s3 + $0x2c] sm:$0xf]
    %v198 = vld [vmem:[%s3 + $0x30] sm:$0xf]
    %v199 = vld [vmem:[%s3 + $0x34] sm:$0xf]
    %v200 = vld [vmem:[%s3 + $0x38] sm:$0xf]
    %v201 = vld [vmem:[%s3 + $0x3c] sm:$0xf]
    %v202 = vld [vmem:[%s3 + $0x40] sm:$0xf]
    %v203 = vld [vmem:[%s3 + $0x44] sm:$0xf]
    %v204 = vld [vmem:[%s3 + $0x48] sm:$0xf]
    %v205 = vld [vmem:[%s3 + $0x4c] sm:$0xf]
    %v206 = vld [vmem:[%s3 + $0x50] sm:$0xf]
    %v207 = vld [vmem:[%s3 + $0x54] sm:$0xf]
    %v208 = vld [vmem:[%s3 + $0x58] sm:$0xf]
    %v209 = vld [vmem:[%s3 + $0x5c] sm:$0xf]
    %v210 = vld [vmem:[%s3 + $0x60] sm:$0xf]
    %v211 = vld [vmem:[%s3 + $0x64] sm:$0xf]
    %v212 = vld [vmem:[%s3 + $0x68] sm:$0xf]
    %v213 = vld [vmem:[%s3 + $0x6c] sm:$0xf]
    %v214 = vld [vmem:[%s3 + $0x70] sm:$0xf]
    %v215 = vld [vmem:[%s3 + $0x74] sm:$0xf]
    %v216 = vld [vmem:[%s3 + $0x78] sm:$0xf]
    %v217 = vld [vmem:[%s3 + $0x7c] sm:$0xf]
    %v218 = vld [vmem:[#allocation6] sm:$0x1]
    %v220 = vlaneseq
    %v221 = vshrl.u32 %v220, 7
    %v222 = vsub.s32 0, %v221
    %v223 = vrot.slane %v218, %v222
    %v257 = vunpack.c.l.b16 %v186
    %v258 = vunpack.c.l.b16 %v187
    %v259 = vunpack.c.l.b16 %v188
    %v260 = vunpack.c.l.b16 %v189
    %v261 = vunpack.c.l.b16 %v190
    %v262 = vunpack.c.l.b16 %v191
    %v263 = vunpack.c.l.b16 %v192
    %v264 = vunpack.c.l.b16 %v193
    %v265 = vunpack.c.l.b16 %v194
    %v266 = vunpack.c.l.b16 %v195
    %v267 = vunpack.c.l.b16 %v196
    %v268 = vunpack.c.l.b16 %v197
    %v269 = vunpack.c.l.b16 %v198
    %v270 = vunpack.c.l.b16 %v199
    %v271 = vunpack.c.l.b16 %v200
    %v272 = vunpack.c.l.b16 %v201
    %v273 = vunpack.c.l.b16 %v202
    %v274 = vunpack.c.l.b16 %v203
    %v275 = vunpack.c.l.b16 %v204
    %v276 = vunpack.c.l.b16 %v205
    %v277 = vunpack.c.l.b16 %v206
    %v278 = vunpack.c.l.b16 %v207
    %v279 = vunpack.c.l.b16 %v208
    %v280 = vunpack.c.l.b16 %v209
    %v281 = vunpack.c.l.b16 %v210
    %v282 = vunpack.c.l.b16 %v211
    %v283 = vunpack.c.l.b16 %v212
    %v284 = vunpack.c.l.b16 %v213
    %v285 = vunpack.c.l.b16 %v214
    %v286 = vunpack.c.l.b16 %v215
    %v287 = vunpack.c.l.b16 %v216
    %v288 = vunpack.c.l.b16 %v217
    %v289 = vpack.c.b16 %v258, %v257
    %v290 = vpack.c.b16 %v260, %v259
    %v291 = vpack.c.b16 %v262, %v261
    %v292 = vpack.c.b16 %v264, %v263
    %v293 = vpack.c.b16 %v266, %v265
    %v294 = vpack.c.b16 %v268, %v267
    %v295 = vpack.c.b16 %v270, %v269
    %v296 = vpack.c.b16 %v272, %v271
    %v297 = vpack.c.b16 %v274, %v273
    %v298 = vpack.c.b16 %v276, %v275
    %v299 = vpack.c.b16 %v278, %v277
    %v300 = vpack.c.b16 %v280, %v279
    %v301 = vpack.c.b16 %v282, %v281
    %v302 = vpack.c.b16 %v284, %v283
    %v303 = vpack.c.b16 %v286, %v285
    %v304 = vpack.c.b16 %v288, %v287
    %321 = vmatprep.subr.bf16.mxu0 0
    %322 = vmatpush1.bf16.msra.mxu0 %v289
    %323 = vmatprep.subr.bf16.mxu0 0
    %324 = vmatpush1.bf16.msra.mxu0 %v290
    %325 = vmatprep.subr.bf16.mxu0 0
    %326 = vmatpush1.bf16.msra.mxu0 %v291
    %327 = vmatprep.subr.bf16.mxu0 0
    %328 = vmatpush1.bf16.msra.mxu0 %v292
    %329 = vmatprep.subr.bf16.mxu0 0
    %330 = vmatpush1.bf16.msra.mxu0 %v293
    %331 = vmatprep.subr.bf16.mxu0 0
    %332 = vmatpush1.bf16.msra.mxu0 %v294
    %333 = vmatprep.subr.bf16.mxu0 0
    %334 = vmatpush1.bf16.msra.mxu0 %v295
    %335 = vmatprep.subr.bf16.mxu0 0
    %336 = vmatpush1.bf16.msra.mxu0 %v296
    %337 = vmatprep.subr.bf16.mxu0 0
    %338 = vmatpush1.bf16.msra.mxu0 %v297
    %339 = vmatprep.subr.bf16.mxu0 0
    %340 = vmatpush1.bf16.msra.mxu0 %v298
    %341 = vmatprep.subr.bf16.mxu0 0
    %342 = vmatpush1.bf16.msra.mxu0 %v299
    %343 = vmatprep.subr.bf16.mxu0 0
    %344 = vmatpush1.bf16.msra.mxu0 %v300
    %345 = vmatprep.subr.bf16.mxu0 0
    %346 = vmatpush1.bf16.msra.mxu0 %v301
    %347 = vmatprep.subr.bf16.mxu0 0
    %348 = vmatpush1.bf16.msra.mxu0 %v302
    %349 = vmatprep.subr.bf16.mxu0 0
    %350 = vmatpush1.bf16.msra.mxu0 %v303
    %351 = vmatprep.subr.bf16.mxu0 0
    %352 = vmatpush1.bf16.msra.mxu0 %v304
    %353 = vmatprep.mubr.bf16.mxu0 %v185
    %354 = vmatmul.mubr.bf16.gmra.mrb[0].mxu0 %v184
    %v355 = vpop.f32.mrb[0].mxu0
    %v356 = vadd.f32 %v223, %v355
    %v357 = vpop.f32.mrb[0].mxu0
    %v358 = vpop.f32.mrb[0].mxu0
    %v359 = vpop.f32.mrb[0].mxu0
    %360 = vdwg.mxu0
    %v361 = vmax.f32 %v356, 0.0
    %v362 = vpack.c.bf16 %v361, %v361
    %v363 = vld [vmem:[%s5] sm:$0xf]
    %v364 = vld [vmem:[%s5 + $0x4] sm:$0xf]
    %v365 = vld [vmem:[%s5 + $0x8] sm:$0xf]
    %v366 = vld [vmem:[%s5 + $0xc] sm:$0xf]
    %v367 = vld [vmem:[%s5 + $0x10] sm:$0xf]
    %v368 = vld [vmem:[%s5 + $0x14] sm:$0xf]
    %v369 = vld [vmem:[%s5 + $0x18] sm:$0xf]
    %v370 = vld [vmem:[%s5 + $0x1c] sm:$0xf]
    %v371 = vld [vmem:[%s5 + $0x20] sm:$0xf]
    %v372 = vld [vmem:[%s5 + $0x24] sm:$0xf]
    %v373 = vld [vmem:[%s5 + $0x28] sm:$0xf]
    %v374 = vld [vmem:[%s5 + $0x2c] sm:$0xf]
    %v375 = vld [vmem:[%s5 + $0x30] sm:$0xf]
    %v376 = vld [vmem:[%s5 + $0x34] sm:$0xf]
    %v377 = vld [vmem:[%s5 + $0x38] sm:$0xf]
    %v378 = vld [vmem:[%s5 + $0x3c] sm:$0xf]
    %v379 = vld [vmem:[#allocation7] sm:$0x1]
    %v381 = vlaneseq
    %v382 = vshrl.u32 %v381, 7
    %v383 = vsub.s32 0, %v382
    %v384 = vrot.slane %v379, %v383
    %v402 = vunpack.c.l.b16 %v363
    %v403 = vunpack.c.l.b16 %v364
    %v404 = vunpack.c.l.b16 %v365
    %v405 = vunpack.c.l.b16 %v366
    %v406 = vunpack.c.l.b16 %v367
    %v407 = vunpack.c.l.b16 %v368
    %v408 = vunpack.c.l.b16 %v369
    %v409 = vunpack.c.l.b16 %v370
    %v410 = vunpack.c.l.b16 %v371
    %v411 = vunpack.c.l.b16 %v372
    %v412 = vunpack.c.l.b16 %v373
    %v413 = vunpack.c.l.b16 %v374
    %v414 = vunpack.c.l.b16 %v375
    %v415 = vunpack.c.l.b16 %v376
    %v416 = vunpack.c.l.b16 %v377
    %v417 = vunpack.c.l.b16 %v378
    %v418 = vpack.c.b16 %v403, %v402
    %v419 = vpack.c.b16 %v405, %v404
    %v420 = vpack.c.b16 %v407, %v406
    %v421 = vpack.c.b16 %v409, %v408
    %v422 = vpack.c.b16 %v411, %v410
    %v423 = vpack.c.b16 %v413, %v412
    %v424 = vpack.c.b16 %v415, %v414
    %v425 = vpack.c.b16 %v417, %v416
    %434 = vmatprep.subr.bf16.mxu0 0
    %435 = vmatpush1.bf16.msra.mxu0 %v418
    %436 = vmatprep.subr.bf16.mxu0 0
    %437 = vmatpush1.bf16.msra.mxu0 %v419
    %438 = vmatprep.subr.bf16.mxu0 0
    %439 = vmatpush1.bf16.msra.mxu0 %v420
    %440 = vmatprep.subr.bf16.mxu0 0
    %441 = vmatpush1.bf16.msra.mxu0 %v421
    %442 = vmatprep.subr.bf16.mxu0 0
    %443 = vmatpush1.bf16.msra.mxu0 %v422
    %444 = vmatprep.subr.bf16.mxu0 0
    %445 = vmatpush1.bf16.msra.mxu0 %v423
    %446 = vmatprep.subr.bf16.mxu0 0
    %447 = vmatpush1.bf16.msra.mxu0 %v424
    %448 = vmatprep.subr.bf16.mxu0 0
    %449 = vmatpush1.bf16.msra.mxu0 %v425
    %450 = vmatprep.subr.bf16.mxu0 0
    %451 = vmatpush1.bf16.msra.mxu0 0
    %452 = vmatprep.subr.bf16.mxu0 0
    %453 = vmatpush1.bf16.msra.mxu0 0
    %454 = vmatprep.subr.bf16.mxu0 0
    %455 = vmatpush1.bf16.msra.mxu0 0
    %456 = vmatprep.subr.bf16.mxu0 0
    %457 = vmatpush1.bf16.msra.mxu0 0
    %458 = vmatprep.subr.bf16.mxu0 0
    %459 = vmatpush1.bf16.msra.mxu0 0
    %460 = vmatprep.subr.bf16.mxu0 0
    %461 = vmatpush1.bf16.msra.mxu0 0
    %462 = vmatprep.subr.bf16.mxu0 0
    %463 = vmatpush1.bf16.msra.mxu0 0
    %464 = vmatprep.subr.bf16.mxu0 0
    %465 = vmatpush1.bf16.msra.mxu0 0
    %466 = vmatprep.mubr.bf16.mxu0 0
    %467 = vmatmul.mubr.bf16.gmra.mrb[0].mxu0 %v362
    %v468 = vpop.f32.mrb[0].mxu0
    %v469 = vadd.f32 %v384, %v468
    %v470 = vpop.f32.mrb[0].mxu0
    %v471 = vpop.f32.mrb[0].mxu0
    %v472 = vpop.f32.mrb[0].mxu0
    %473 = vdwg.mxu0
    %v474 = vmax.f32 %v469, 0.0
    %v475 = vpack.c.bf16 %v474, %v474
    %v476 = vld [vmem:[%s7] sm:$0xf]
    %v477 = vld [vmem:[%s7 + $0x4] sm:$0xf]
    %v478 = vld [vmem:[%s7 + $0x8] sm:$0xf]
    %v479 = vld [vmem:[%s7 + $0xc] sm:$0xf]
    %v480 = vld [vmem:[%s7 + $0x10] sm:$0xf]
    %v481 = vld [vmem:[%s7 + $0x14] sm:$0xf]
    %v482 = vld [vmem:[%s7 + $0x18] sm:$0xf]
    %v483 = vld [vmem:[%s7 + $0x1c] sm:$0xf]
    %v484 = vld [vmem:[#allocation9] sm:$0x1]
    %v486 = vlaneseq
    %v487 = vshrl.u32 %v486, 7
    %v488 = vsub.s32 0, %v487
    %v489 = vrot.slane %v484, %v488
    %v499 = vunpack.c.l.b16 %v476
    %v500 = vunpack.c.l.b16 %v477
    %v501 = vunpack.c.l.b16 %v478
    %v502 = vunpack.c.l.b16 %v479
    %v503 = vunpack.c.l.b16 %v480
    %v504 = vunpack.c.l.b16 %v481
    %v505 = vunpack.c.l.b16 %v482
    %v506 = vunpack.c.l.b16 %v483
    %v507 = vpack.c.b16 %v500, %v499
    %v508 = vpack.c.b16 %v502, %v501
    %v509 = vpack.c.b16 %v504, %v503
    %v510 = vpack.c.b16 %v506, %v505
    %vm515 = vcmask 523264
    %v517 = vsel %vm515, %v475, 0
    %519 = vmatprep.subr.bf16.mxu0 0
    %520 = vmatpush1.bf16.msra.mxu0 %v507
    %521 = vmatprep.subr.bf16.mxu0 0
    %522 = vmatpush1.bf16.msra.mxu0 %v508
    %523 = vmatprep.subr.bf16.mxu0 0
    %524 = vmatpush1.bf16.msra.mxu0 %v509
    %525 = vmatprep.subr.bf16.mxu0 0
    %526 = vmatpush1.bf16.msra.mxu0 %v510
    %527 = vmatprep.subr.bf16.mxu0 0
    %528 = vmatpush1.bf16.msra.mxu0 0
    %529 = vmatprep.subr.bf16.mxu0 0
    %530 = vmatpush1.bf16.msra.mxu0 0
    %531 = vmatprep.subr.bf16.mxu0 0
    %532 = vmatpush1.bf16.msra.mxu0 0
    %533 = vmatprep.subr.bf16.mxu0 0
    %534 = vmatpush1.bf16.msra.mxu0 0
    %535 = vmatprep.subr.bf16.mxu0 0
    %536 = vmatpush1.bf16.msra.mxu0 0
    %537 = vmatprep.subr.bf16.mxu0 0
    %538 = vmatpush1.bf16.msra.mxu0 0
    %539 = vmatprep.subr.bf16.mxu0 0
    %540 = vmatpush1.bf16.msra.mxu0 0
    %541 = vmatprep.subr.bf16.mxu0 0
    %542 = vmatpush1.bf16.msra.mxu0 0
    %543 = vmatprep.subr.bf16.mxu0 0
    %544 = vmatpush1.bf16.msra.mxu0 0
    %545 = vmatprep.subr.bf16.mxu0 0
    %546 = vmatpush1.bf16.msra.mxu0 0
    %547 = vmatprep.subr.bf16.mxu0 0
    %548 = vmatpush1.bf16.msra.mxu0 0
    %549 = vmatprep.subr.bf16.mxu0 0
    %550 = vmatpush1.bf16.msra.mxu0 0
    %551 = vmatprep.mubr.bf16.mxu0 0
    %552 = vmatmul.mubr.bf16.gmra.mrb[0].mxu0 %v517
    %v553 = vpop.f32.mrb[0].mxu0
    %v554 = vadd.f32 %v489, %v553
    %v555 = vpop.f32.mrb[0].mxu0
    %v556 = vpop.f32.mrb[0].mxu0
    %v557 = vpop.f32.mrb[0].mxu0
    %558 = vdwg.mxu0
    %v559 = vmax.f32 %v554, 0.0
    %v560 = vpack.c.bf16 %v559, %v559
    %v561 = vld [vmem:[%s9] sm:$0xf]
    %v562 = vld [vmem:[%s9 + $0x4] sm:$0xf]
    %v563 = vld [vmem:[%s9 + $0x8] sm:$0xf]
    %v564 = vld [vmem:[%s9 + $0xc] sm:$0xf]
    %v565 = vld [vmem:[%s9 + $0x10] sm:$0xf]
    %v566 = vld [vmem:[%s9 + $0x14] sm:$0xf]
    %v567 = vld [vmem:[%s9 + $0x18] sm:$0xf]
    %v568 = vld [vmem:[%s9 + $0x1c] sm:$0xf]
    %v569 = vld [vmem:[%s10] sm:$0x1]
    %v571 = vlaneseq
    %v572 = vshrl.u32 %v571, 7
    %v573 = vsub.s32 0, %v572
    %v574 = vrot.slane %v569, %v573
    %v584 = vunpack.c.l.b16 %v561
    %v585 = vunpack.c.l.b16 %v562
    %v586 = vunpack.c.l.b16 %v563
    %v587 = vunpack.c.l.b16 %v564
    %v588 = vunpack.c.l.b16 %v565
    %v589 = vunpack.c.l.b16 %v566
    %v590 = vunpack.c.l.b16 %v567
    %v591 = vunpack.c.l.b16 %v568
    %v592 = vpack.c.b16 %v585, %v584
    %v593 = vpack.c.b16 %v587, %v586
    %v594 = vpack.c.b16 %v589, %v588
    %v595 = vpack.c.b16 %v591, %v590
    %v601 = vsel %vm515, %v560, 0
    %603 = vmatprep.subr.bf16.mxu0 0
    %604 = vmatpush1.bf16.msra.mxu0 %v592
    %605 = vmatprep.subr.bf16.mxu0 0
    %606 = vmatpush1.bf16.msra.mxu0 %v593
    %607 = vmatprep.subr.bf16.mxu0 0
    %608 = vmatpush1.bf16.msra.mxu0 %v594
    %609 = vmatprep.subr.bf16.mxu0 0
    %610 = vmatpush1.bf16.msra.mxu0 %v595
    %611 = vmatprep.subr.bf16.mxu0 0
    %612 = vmatpush1.bf16.msra.mxu0 0
    %613 = vmatprep.subr.bf16.mxu0 0
    %614 = vmatpush1.bf16.msra.mxu0 0
    %615 = vmatprep.subr.bf16.mxu0 0
    %616 = vmatpush1.bf16.msra.mxu0 0
    %617 = vmatprep.subr.bf16.mxu0 0
    %618 = vmatpush1.bf16.msra.mxu0 0
    %619 = vmatprep.subr.bf16.mxu0 0
    %620 = vmatpush1.bf16.msra.mxu0 0
    %621 = vmatprep.subr.bf16.mxu0 0
    %622 = vmatpush1.bf16.msra.mxu0 0
    %623 = vmatprep.subr.bf16.mxu0 0
    %624 = vmatpush1.bf16.msra.mxu0 0
    %625 = vmatprep.subr.bf16.mxu0 0
    %626 = vmatpush1.bf16.msra.mxu0 0
    %627 = vmatprep.subr.bf16.mxu0 0
    %628 = vmatpush1.bf16.msra.mxu0 0
    %629 = vmatprep.subr.bf16.mxu0 0
    %630 = vmatpush1.bf16.msra.mxu0 0
    %631 = vmatprep.subr.bf16.mxu0 0
    %632 = vmatpush1.bf16.msra.mxu0 0
    %633 = vmatprep.subr.bf16.mxu0 0
    %634 = vmatpush1.bf16.msra.mxu0 0
    %635 = vmatprep.mubr.bf16.mxu0 0
    %636 = vmatmul.mubr.bf16.gmra.mrb[0].mxu0 %v601
    %v637 = vpop.f32.mrb[0].mxu0
    %v638 = vadd.f32 %v574, %v637
    %v639 = vpop.f32.mrb[0].mxu0
    %v640 = vpop.f32.mrb[0].mxu0
    %v641 = vpop.f32.mrb[0].mxu0
    %642 = vdwg.mxu0
    %v643 = vlaneseq
    %v644 = vand.u32 %v643, 127
    %vm645 = vcmp.lt.s32.totalorder %v644, 3
    %v646 = vtanh.pop %v638
    %v647 = vsel %vm645, %v646, %v638
    %v648 = vpack.c.bf16 %v647, %v647
    %vm649 = vcmask 125952
    %650 = vst.msk [vmem:[%s11] sm:$0xf] %vm649, %v648
    // Predicated region
    $region66: #{race_controller_forward.1} parent=1 // pred_check
      _
    $region67: #{race_controller_forward.1} parent=1 // pred_check_branch
      %652 = sbr.rel (0) target = $region69
    $region68: #{race_controller_forward.1} parent=1 // pred_region
      _
    $region69: #{race_controller_forward.1} parent=1 // pred_fallthru
      _
    // Predicated region
    $region70: #{race_controller_forward.1} parent=1 // pred_check
      _
    $region71: #{race_controller_forward.1} parent=1 // pred_check_branch
      %654 = sbr.rel (0) target = $region73
    $region72: #{race_controller_forward.1} parent=1 // pred_region
      _
    $region73: #{race_controller_forward.1} parent=1 // pred_fallthru
      _
    %655 = vsyncpa [#allocation3], 1
    %656 = vsyncpa [#allocation5], 1
    %657 = vsyncpa [#allocation8], 1

</llo_original>
